<compile_context>
chip_gen: v6e
topology: v6e:2x2x1
jax: 0.10.0
libtpu: 0.0.40
codegen_flags: <defaults>
</compile_context>

<pallas_src>
import numpy as np
import jax
import jax.numpy as jnp
from jax.experimental import pallas as pl
from jax.experimental.pallas import tpu as pltpu

LANE = 128


# ----------------------------------------------------------------------------
# Fused Pallas kernel: full EdgeNet_Ori forward for one graph (one grid step).
# ----------------------------------------------------------------------------
def edgenet_kernel(h0_ref, x_ref, a1_ref, s_ref, a2_ref, w1_ref, w2_ref, b_ref,
                   o_ref):
    f32, bf16 = jnp.float32, jnp.bfloat16

    # conv1: relu(A1_hat @ (h0 @ W1) + b1) over E edge-rows.
    xw1 = jnp.dot(h0_ref[...], w1_ref[...], preferred_element_type=f32)  # (E,128)
    h1 = jnp.maximum(
        jnp.dot(a1_ref[...], xw1.astype(bf16), preferred_element_type=f32)
        + b_ref[0], 0.0)                                                  # (E,128)

    # scatter_mean(h1, col, dim_size=N) as a dense operator matmul.
    agg = jnp.dot(s_ref[...], h1.astype(bf16), preferred_element_type=f32)  # (N,128)

    # conv2: relu(A2_hat @ ([x | agg] @ W2) + b2); concat folded into stacked W2.
    xw2 = (jnp.dot(x_ref[...], w2_ref[0], preferred_element_type=f32)
           + jnp.dot(agg.astype(bf16), w2_ref[1], preferred_element_type=f32))
    h2 = jnp.maximum(
        jnp.dot(a2_ref[...], xw2.astype(bf16), preferred_element_type=f32)
        + b_ref[1], 0.0)                                                  # (N,128)

    # Readout: mean over nodes, written as a lane-dense (8,128) tile.
    o_ref[...] = jnp.broadcast_to(jnp.mean(h2, axis=0, keepdims=True), o_ref.shape)


# ----------------------------------------------------------------------------
# Wrapper: grid over graphs, per-graph feature blocks, shared operator blocks.
# ----------------------------------------------------------------------------
def edgenet_forward(h0, x, a1, s, a2, w1, w2, b, d_out):
    bsz, e, _ = h0.shape
    n = x.shape[1]
    out = pl.pallas_call(
        edgenet_kernel,
        grid=(bsz,),
        out_shape=jax.ShapeDtypeStruct((bsz, 8, LANE), jnp.float32),
        in_specs=[
            pl.BlockSpec((None, e, LANE), lambda g: (g, 0, 0)),   # h0 (per graph)
            pl.BlockSpec((None, n, LANE), lambda g: (g, 0, 0)),   # x  (per graph)
            pl.BlockSpec((e, e), lambda g: (0, 0)),               # A1_hat  (shared)
            pl.BlockSpec((n, e), lambda g: (0, 0)),               # S_mean  (shared)
            pl.BlockSpec((n, n), lambda g: (0, 0)),               # A2_hat  (shared)
            pl.BlockSpec((LANE, LANE), lambda g: (0, 0)),         # W1 (padded)
            pl.BlockSpec((2, LANE, LANE), lambda g: (0, 0, 0)),   # W2 stacked
            pl.BlockSpec((2, 1, LANE), lambda g: (0, 0, 0)),      # biases (f32)
        ],
        out_specs=pl.BlockSpec((None, 8, LANE), lambda g: (g, 0, 0)),
        compiler_params=pltpu.CompilerParams(
            dimension_semantics=("parallel",),
            vmem_limit_bytes=32 * 1024 * 1024),
    )(h0, x, a1, s, a2, w1, w2, b)
    return out[:, 0, :d_out]


# ----------------------------------------------------------------------------
# Host-side graph densification (mirrors PyG GCNConv gcn_norm / torch_scatter).
# ----------------------------------------------------------------------------
def gcn_normalized_adjacency(edge_index, num_nodes):
    # add self loops, deg = in-degree (dst); A_hat[dst, src] = d_src^-1/2 d_dst^-1/2
    src = np.concatenate([edge_index[0], np.arange(num_nodes)])
    dst = np.concatenate([edge_index[1], np.arange(num_nodes)])
    deg = np.zeros(num_nodes, dtype=np.float32)
    np.add.at(deg, dst, 1.0)
    dinv = np.where(deg > 0, 1.0 / np.sqrt(deg), 0.0).astype(np.float32)
    a_hat = np.zeros((num_nodes, num_nodes), dtype=np.float32)
    np.add.at(a_hat, (dst, src), dinv[src] * dinv[dst])
    return a_hat


def scatter_mean_matrix(col, dim_size):
    e = col.shape[0]
    s = np.zeros((dim_size, e), dtype=np.float32)
    np.add.at(s, (col, np.arange(e)), 1.0)
    cnt = s.sum(axis=1, keepdims=True)
    return np.where(cnt > 0, s / np.maximum(cnt, 1.0), 0.0).astype(np.float32)


def glorot(key, fan_in, fan_out):
    limit = np.sqrt(6.0 / (fan_in + fan_out))
    return jax.random.uniform(key, (fan_in, fan_out), jnp.float32, -limit, limit)


# ----------------------------------------------------------------------------
# Main
# ----------------------------------------------------------------------------
if __name__ == "__main__":
    B = 8                     # batched graphs (shared topology, per-graph feats)
    N = 16                    # nodes per graph
    E = 40                    # edges per graph (E != N-1 -> linear=False branch)
    D_IN, D_HID, D_OUT = 50, 50, 100   # module defaults

    key = jax.random.PRNGKey(0)
    kx, ke, kw1, kw2 = jax.random.split(key, 4)
    x = jax.random.normal(kx, (B, N, D_IN), jnp.float32)
    edge_attr = jax.random.normal(ke, (B, E, D_IN), jnp.float32)

    rng = np.random.RandomState(0)
    edge_index = np.stack(
        [rng.randint(0, N, size=E), rng.randint(0, N, size=E)]).astype(np.int32)
    row, col = edge_index[0], edge_index[1]

    # GCNConv params: conv1(2*IN -> HID), conv2(IN + HID -> OUT).
    w1 = glorot(kw1, 2 * D_IN, D_HID)
    b1 = jnp.full((D_HID,), 0.01, jnp.float32)
    w2 = glorot(kw2, D_IN + D_HID, D_OUT)
    b2 = jnp.full((D_OUT,), 0.02, jnp.float32)

    # Dense graph operators (shared across the batch; built once on host).
    a1 = gcn_normalized_adjacency(edge_index, E)   # conv1 sees E "node" rows
    s = scatter_mean_matrix(col, N)
    a2 = gcn_normalized_adjacency(edge_index, N)

    # Wrapper-side prep: gather + concat + lane padding + bf16 cast.
    h0 = jnp.concatenate([x[:, row, :], edge_attr], axis=-1)          # [B,E,100]
    h0p = jnp.pad(h0, ((0, 0), (0, 0), (0, LANE - 2 * D_IN))).astype(jnp.bfloat16)
    xp = jnp.pad(x, ((0, 0), (0, 0), (0, LANE - D_IN))).astype(jnp.bfloat16)

    w1np = np.zeros((LANE, LANE), np.float32)
    w1np[:2 * D_IN, :D_HID] = np.asarray(w1)
    w2np = np.zeros((2, LANE, LANE), np.float32)
    w2np[0, :D_IN, :D_OUT] = np.asarray(w2)[:D_IN]      # multiplies x part
    w2np[1, :D_HID, :D_OUT] = np.asarray(w2)[D_IN:]     # multiplies agg part
    bnp = np.zeros((2, 1, LANE), np.float32)
    bnp[0, 0, :D_HID] = np.asarray(b1)
    bnp[1, 0, :D_OUT] = np.asarray(b2)

    a1b = jnp.asarray(a1, jnp.bfloat16)
    sb = jnp.asarray(s, jnp.bfloat16)
    a2b = jnp.asarray(a2, jnp.bfloat16)
    w1b = jnp.asarray(w1np, jnp.bfloat16)
    w2s = jnp.asarray(w2np, jnp.bfloat16)
    bj = jnp.asarray(bnp)                               # biases stay f32

    out = edgenet_forward(h0p, xp, a1b, sb, a2b, w1b, w2s, bj, D_OUT)
    out = jax.block_until_ready(out)

    # Pure-JAX reference mirroring the kernel's dtypes (bf16 operands, f32
    # accumulation + f32 bias/relu epilogue).
    def ref_one(h0g, xg):
        f32, bf16 = jnp.float32, jnp.bfloat16
        xw1 = jnp.dot(h0g, w1b, preferred_element_type=f32)
        h1 = jnp.maximum(
            jnp.dot(a1b, xw1.astype(bf16), preferred_element_type=f32) + bj[0], 0.0)
        agg = jnp.dot(sb, h1.astype(bf16), preferred_element_type=f32)
        xw2 = (jnp.dot(xg, w2s[0], preferred_element_type=f32)
               + jnp.dot(agg.astype(bf16), w2s[1], preferred_element_type=f32))
        h2 = jnp.maximum(
            jnp.dot(a2b, xw2.astype(bf16), preferred_element_type=f32) + bj[1], 0.0)
        return jnp.mean(h2, axis=0)[:D_OUT]

    ref = jax.block_until_ready(jax.vmap(ref_one)(h0p, xp))

    np.testing.assert_allclose(np.asarray(out), np.asarray(ref),
                               rtol=5e-3, atol=5e-3)
    assert out.shape == (B, D_OUT)
    print("KERNEL_OK")
</pallas_src>

<mosaic_0001>
module attributes {stable_mosaic.version = 11 : i64} {
  func.func @edgenet_kernel(%arg0: i32, %arg1: memref<1x40x128xbf16, #tpu.memory_space<vmem>>, %arg2: memref<1x16x128xbf16, #tpu.memory_space<vmem>>, %arg3: memref<40x40xbf16, #tpu.memory_space<vmem>>, %arg4: memref<16x40xbf16, #tpu.memory_space<vmem>>, %arg5: memref<16x16xbf16, #tpu.memory_space<vmem>>, %arg6: memref<128x128xbf16, #tpu.memory_space<vmem>>, %arg7: memref<2x128x128xbf16, #tpu.memory_space<vmem>>, %arg8: memref<2x1x128xf32, #tpu.memory_space<vmem>>, %arg9: memref<1x8x128xf32, #tpu.memory_space<vmem>>) attributes {dimension_semantics = [#tpu.dimension_semantics<parallel>], iteration_bounds = array<i64: 8>, scalar_prefetch = 0 : i64, scratch_operands = 0 : i64, tpu.core_type = #tpu.core_type<tc>, window_params = [{transform_indices = @transform_0, window_bounds = array<i64: 1, 40, 128>}, {transform_indices = @transform_1, window_bounds = array<i64: 1, 16, 128>}, {pipeline_mode = #tpu.pipeline_mode<synchronous>, transform_indices = @transform_2, window_bounds = array<i64: 40, 40>}, {pipeline_mode = #tpu.pipeline_mode<synchronous>, transform_indices = @transform_3, window_bounds = array<i64: 16, 40>}, {pipeline_mode = #tpu.pipeline_mode<synchronous>, transform_indices = @transform_4, window_bounds = array<i64: 16, 16>}, {pipeline_mode = #tpu.pipeline_mode<synchronous>, transform_indices = @transform_5, window_bounds = array<i64: 128, 128>}, {pipeline_mode = #tpu.pipeline_mode<synchronous>, transform_indices = @transform_6, window_bounds = array<i64: 2, 128, 128>}, {pipeline_mode = #tpu.pipeline_mode<synchronous>, transform_indices = @transform_7, window_bounds = array<i64: 2, 1, 128>}, {transform_indices = @transform_8, window_bounds = array<i64: 1, 8, 128>}]} {
    %c0 = arith.constant 0 : index
    %c0_0 = arith.constant 0 : index
    %c0_1 = arith.constant 0 : index
    %0 = vector.load %arg1[%c0, %c0_0, %c0_1] : memref<1x40x128xbf16, #tpu.memory_space<vmem>>, vector<1x40x128xbf16>
    %1 = vector.shape_cast %0 : vector<1x40x128xbf16> to vector<40x128xbf16>
    %c0_2 = arith.constant 0 : index
    %c0_3 = arith.constant 0 : index
    %2 = vector.load %arg6[%c0_2, %c0_3] : memref<128x128xbf16, #tpu.memory_space<vmem>>, vector<128x128xbf16>
    %cst = arith.constant dense<0.000000e+00> : vector<40x128xf32>
    %3 = tpu.matmul %1, %2, %cst {dimension_numbers = #tpu.dot_dimension_numbers<[1], [0], [0], [1], [0, 0, 1, 1], [], []>} : vector<40x128xbf16>, vector<128x128xbf16>, vector<40x128xf32> -> vector<40x128xf32>
    %c0_4 = arith.constant 0 : index
    %c0_5 = arith.constant 0 : index
    %4 = vector.load %arg3[%c0_4, %c0_5] : memref<40x40xbf16, #tpu.memory_space<vmem>>, vector<40x40xbf16>
    %5 = arith.truncf %3 : vector<40x128xf32> to vector<40x128xbf16>
    %cst_6 = arith.constant dense<0.000000e+00> : vector<40x128xf32>
    %6 = tpu.matmul %4, %5, %cst_6 {dimension_numbers = #tpu.dot_dimension_numbers<[1], [0], [0], [1], [0, 0, 1, 1], [], []>} : vector<40x40xbf16>, vector<40x128xbf16>, vector<40x128xf32> -> vector<40x128xf32>
    %c0_7 = arith.constant 0 : index
    %c0_8 = arith.constant 0 : index
    %c0_9 = arith.constant 0 : index
    %7 = vector.load %arg8[%c0_7, %c0_8, %c0_9] : memref<2x1x128xf32, #tpu.memory_space<vmem>>, vector<1x1x128xf32>
    %8 = vector.shape_cast %7 : vector<1x1x128xf32> to vector<1x128xf32>
    %9 = vector.broadcast %8 : vector<1x128xf32> to vector<40x128xf32>
    %10 = arith.addf %6, %9 : vector<40x128xf32>
    %cst_10 = arith.constant 0.000000e+00 : f32
    %11 = vector.broadcast %cst_10 : f32 to vector<40x128xf32>
    %12 = arith.maximumf %10, %11 : vector<40x128xf32>
    %c0_11 = arith.constant 0 : index
    %c0_12 = arith.constant 0 : index
    %13 = vector.load %arg4[%c0_11, %c0_12] : memref<16x40xbf16, #tpu.memory_space<vmem>>, vector<16x40xbf16>
    %14 = arith.truncf %12 : vector<40x128xf32> to vector<40x128xbf16>
    %cst_13 = arith.constant dense<0.000000e+00> : vector<16x128xf32>
    %15 = tpu.matmul %13, %14, %cst_13 {dimension_numbers = #tpu.dot_dimension_numbers<[1], [0], [0], [1], [0, 0, 1, 1], [], []>} : vector<16x40xbf16>, vector<40x128xbf16>, vector<16x128xf32> -> vector<16x128xf32>
    %c0_14 = arith.constant 0 : index
    %c0_15 = arith.constant 0 : index
    %c0_16 = arith.constant 0 : index
    %16 = vector.load %arg2[%c0_14, %c0_15, %c0_16] : memref<1x16x128xbf16, #tpu.memory_space<vmem>>, vector<1x16x128xbf16>
    %17 = vector.shape_cast %16 : vector<1x16x128xbf16> to vector<16x128xbf16>
    %c0_17 = arith.constant 0 : index
    %c0_18 = arith.constant 0 : index
    %c0_19 = arith.constant 0 : index
    %18 = vector.load %arg7[%c0_17, %c0_18, %c0_19] : memref<2x128x128xbf16, #tpu.memory_space<vmem>>, vector<1x128x128xbf16>
    %19 = vector.shape_cast %18 : vector<1x128x128xbf16> to vector<128x128xbf16>
    %cst_20 = arith.constant dense<0.000000e+00> : vector<16x128xf32>
    %20 = tpu.matmul %17, %19, %cst_20 {dimension_numbers = #tpu.dot_dimension_numbers<[1], [0], [0], [1], [0, 0, 1, 1], [], []>} : vector<16x128xbf16>, vector<128x128xbf16>, vector<16x128xf32> -> vector<16x128xf32>
    %21 = arith.truncf %15 : vector<16x128xf32> to vector<16x128xbf16>
    %c1 = arith.constant 1 : index
    %c0_21 = arith.constant 0 : index
    %c0_22 = arith.constant 0 : index
    %22 = vector.load %arg7[%c1, %c0_21, %c0_22] : memref<2x128x128xbf16, #tpu.memory_space<vmem>>, vector<1x128x128xbf16>
    %23 = vector.shape_cast %22 : vector<1x128x128xbf16> to vector<128x128xbf16>
    %cst_23 = arith.constant dense<0.000000e+00> : vector<16x128xf32>
    %24 = tpu.matmul %21, %23, %cst_23 {dimension_numbers = #tpu.dot_dimension_numbers<[1], [0], [0], [1], [0, 0, 1, 1], [], []>} : vector<16x128xbf16>, vector<128x128xbf16>, vector<16x128xf32> -> vector<16x128xf32>
    %25 = arith.addf %20, %24 : vector<16x128xf32>
    %c0_24 = arith.constant 0 : index
    %c0_25 = arith.constant 0 : index
    %26 = vector.load %arg5[%c0_24, %c0_25] : memref<16x16xbf16, #tpu.memory_space<vmem>>, vector<16x16xbf16>
    %27 = arith.truncf %25 : vector<16x128xf32> to vector<16x128xbf16>
    %cst_26 = arith.constant dense<0.000000e+00> : vector<16x128xf32>
    %28 = tpu.matmul %26, %27, %cst_26 {dimension_numbers = #tpu.dot_dimension_numbers<[1], [0], [0], [1], [0, 0, 1, 1], [], []>} : vector<16x16xbf16>, vector<16x128xbf16>, vector<16x128xf32> -> vector<16x128xf32>
    %c1_27 = arith.constant 1 : index
    %c0_28 = arith.constant 0 : index
    %c0_29 = arith.constant 0 : index
    %29 = vector.load %arg8[%c1_27, %c0_28, %c0_29] : memref<2x1x128xf32, #tpu.memory_space<vmem>>, vector<1x1x128xf32>
    %30 = vector.shape_cast %29 : vector<1x1x128xf32> to vector<1x128xf32>
    %31 = vector.broadcast %30 : vector<1x128xf32> to vector<16x128xf32>
    %32 = arith.addf %28, %31 : vector<16x128xf32>
    %cst_30 = arith.constant 0.000000e+00 : f32
    %33 = vector.broadcast %cst_30 : f32 to vector<16x128xf32>
    %34 = arith.maximumf %32, %33 : vector<16x128xf32>
    %cst_31 = arith.constant dense<0.000000e+00> : vector<128xf32>
    %35 = vector.multi_reduction <add>, %34, %cst_31 [0] : vector<16x128xf32> to vector<128xf32>
    %36 = vector.shape_cast %35 : vector<128xf32> to vector<1x128xf32>
    %cst_32 = arith.constant 1.600000e+01 : f32
    %37 = vector.broadcast %cst_32 : f32 to vector<1x128xf32>
    %38 = arith.divf %36, %37 : vector<1x128xf32>
    %39 = vector.shape_cast %38 : vector<1x128xf32> to vector<1x128xf32>
    %40 = vector.broadcast %39 : vector<1x128xf32> to vector<8x128xf32>
    %c0_33 = arith.constant 0 : index
    %c0_34 = arith.constant 0 : index
    %c0_35 = arith.constant 0 : index
    %41 = vector.load %arg9[%c0_33, %c0_34, %c0_35] : memref<1x8x128xf32, #tpu.memory_space<vmem>>, vector<1x8x128xf32>
    %42 = vector.shape_cast %41 : vector<1x8x128xf32> to vector<8x128xf32>
    %43 = vector.shape_cast %40 : vector<8x128xf32> to vector<1x8x128xf32>
    tpu.vector_store %arg9[%c0_33, %c0_34, %c0_35], %43 {strides = array<i32>} : memref<1x8x128xf32, #tpu.memory_space<vmem>>, vector<1x8x128xf32>,
    return
  }
  func.func @transform_0(%arg0: i32) -> (i32, i32, i32) {
    %c0_i32 = arith.constant 0 : i32
    %c0_i32_0 = arith.constant 0 : i32
    %c0_i32_1 = arith.constant 0 : i32
    return %arg0, %c0_i32, %c0_i32_0 : i32, i32, i32
  }
  func.func @transform_1(%arg0: i32) -> (i32, i32, i32) {
    %c0_i32 = arith.constant 0 : i32
    %c0_i32_0 = arith.constant 0 : i32
    %c0_i32_1 = arith.constant 0 : i32
    return %arg0, %c0_i32, %c0_i32_0 : i32, i32, i32
  }
  func.func @transform_2(%arg0: i32) -> (i32, i32) {
    %c0_i32 = arith.constant 0 : i32
    %c0_i32_0 = arith.constant 0 : i32
    %c0_i32_1 = arith.constant 0 : i32
    return %c0_i32, %c0_i32_0 : i32, i32
  }
  func.func @transform_3(%arg0: i32) -> (i32, i32) {
    %c0_i32 = arith.constant 0 : i32
    %c0_i32_0 = arith.constant 0 : i32
    %c0_i32_1 = arith.constant 0 : i32
    return %c0_i32, %c0_i32_0 : i32, i32
  }
  func.func @transform_4(%arg0: i32) -> (i32, i32) {
    %c0_i32 = arith.constant 0 : i32
    %c0_i32_0 = arith.constant 0 : i32
    %c0_i32_1 = arith.constant 0 : i32
    return %c0_i32, %c0_i32_0 : i32, i32
  }
  func.func @transform_5(%arg0: i32) -> (i32, i32) {
    %c0_i32 = arith.constant 0 : i32
    %c0_i32_0 = arith.constant 0 : i32
    %c0_i32_1 = arith.constant 0 : i32
    return %c0_i32, %c0_i32_0 : i32, i32
  }
  func.func @transform_6(%arg0: i32) -> (i32, i32, i32) {
    %c0_i32 = arith.constant 0 : i32
    %c0_i32_0 = arith.constant 0 : i32
    %c0_i32_1 = arith.constant 0 : i32
    %c0_i32_2 = arith.constant 0 : i32
    return %c0_i32, %c0_i32_0, %c0_i32_1 : i32, i32, i32
  }
  func.func @transform_7(%arg0: i32) -> (i32, i32, i32) {
    %c0_i32 = arith.constant 0 : i32
    %c0_i32_0 = arith.constant 0 : i32
    %c0_i32_1 = arith.constant 0 : i32
    %c0_i32_2 = arith.constant 0 : i32
    return %c0_i32, %c0_i32_0, %c0_i32_1 : i32, i32, i32
  }
  func.func @transform_8(%arg0: i32) -> (i32, i32, i32) {
    %c0_i32 = arith.constant 0 : i32
    %c0_i32_0 = arith.constant 0 : i32
    %c0_i32_1 = arith.constant 0 : i32
    return %arg0, %c0_i32, %c0_i32_0 : i32, i32, i32
  }
}

</mosaic_0001>

<llo_original>
// kernel: tpu_custom_call.1
$region0: #{tpu_custom_call.1}
  #allocation0 [shape = 'u32[]', space=smem, size = 0x4, offset = 0x4, fixed_abs, tag = 'smem constant byte address 0x4 - core index']
  #allocation1 [shape = 'u32[144,128]{1,0:T(1,128)}', space=vmem, size = 0x12000, scoped, tag = 'internal scratch']
  %s0 = inlined_call_operand.hbm [shape: bf16[8,40,128], index: 0, kind: input, shape index: {}]
  %s1 = inlined_call_operand.hbm [shape: bf16[8,16,128], index: 1, kind: input, shape index: {}]
  %s2 = inlined_call_operand.hbm [shape: bf16[40,40], index: 2, kind: input, shape index: {}]
  %s3 = inlined_call_operand.hbm [shape: bf16[16,40], index: 3, kind: input, shape index: {}]
  %s4 = inlined_call_operand.hbm [shape: bf16[16,16], index: 4, kind: input, shape index: {}]
  %s5 = inlined_call_operand.hbm [shape: bf16[128,128], index: 5, kind: input, shape index: {}]
  %s6 = inlined_call_operand.hbm [shape: bf16[2,128,128], index: 6, kind: input, shape index: {}]
  %s7 = inlined_call_operand.vmem [shape: f32[2,1,128], index: 7, kind: input, shape index: {}]
  %s8 = inlined_call_operand.hbm [shape: f32[8,8,128], index: 8, kind: output, shape index: {}]
  %s9 = sld [smem:[#allocation0]]
  $region93: #{tpu_custom_call.1} parent=0
    _
  %s11 = ssub.s32 1, %s9
  %s12 = scalar_select 0, %s11, %s9
  $region1: #{tpu_custom_call.1} parent=0
    #allocation2 [shape = 'u8[20480]{0}', space=vmem, size = 0x5000, scoped, tag = 'input window, operand 0']
    #allocation3 [shape = 's32[2]{0}', space=sflag, size = 0x8, scoped, tag = 'scoped memory for tpu_custom_call.1']
    #allocation4 [shape = 's32[2]{0}', space=sflag, size = 0x8, scoped, tag = 'scoped memory for tpu_custom_call.1']
    #allocation5 [shape = 'u8[8192]{0}', space=vmem, size = 0x2000, scoped, tag = 'input window, operand 1']
    #allocation6 [shape = 's32[2]{0}', space=sflag, size = 0x8, scoped, tag = 'scoped memory for tpu_custom_call.1']
    #allocation7 [shape = 'u8[10240]{0}', space=vmem, size = 0x2800, scoped, tag = 'input window, operand 2, single buffered']
    #allocation8 [shape = 'u8[4096]{0}', space=vmem, size = 0x1000, scoped, tag = 'input window, operand 3, single buffered']
    #allocation9 [shape = 's32[1]{0}', space=sflag, size = 0x4, scoped, tag = 'scoped memory for tpu_custom_call.1']
    #allocation10 [shape = 'u8[4096]{0}', space=vmem, size = 0x1000, scoped, tag = 'input window, operand 4, single buffered']
    #allocation11 [shape = 'u8[32768]{0}', space=vmem, size = 0x8000, scoped, tag = 'input window, operand 5, single buffered']
    #allocation12 [shape = 's32[1]{0}', space=sflag, size = 0x4, scoped, tag = 'scoped memory for tpu_custom_call.1']
    #allocation13 [shape = 'u8[65536]{0}', space=vmem, size = 0x10000, scoped, tag = 'input window, operand 6, single buffered']
    #allocation14 [shape = 'u8[8192]{0}', space=vmem, size = 0x2000, scoped, tag = 'output window, operand 0']
    %13 = vsyncpa [#allocation3], 0
    %s14 = scalar_lea.sflag [#allocation3], 1
    %15 = vsyncpa %s14, 0
    %16 = vsyncpa [#allocation6], 0
    %s17 = scalar_lea.sflag [#allocation6], 1
    %18 = vsyncpa %s17, 0
    %19 = vsyncpa [#allocation9], 0
    %20 = vsyncpa [#allocation12], 0
    %21 = vsyncpa [#allocation4], 0
    %s22 = scalar_lea.sflag [#allocation4], 1
    %23 = vsyncpa %s22, 0
    loop: start=0, step=1, limit=10
    $region2: #{tpu_custom_call.1} parent=1 // loop_pre_header
      _
    $region3: #{tpu_custom_call.1} parent=1 // loop_header
      %s25 = sphi 0, %s29
      %p26 = scmp.ge.s32.totalorder %s25, 10
      %s35 = sphi 0, %s37
      %s38 = sphi 0, %s35
      %s39 = sphi 0, %s38
      %s55 = sphi 0, %s39
      %s61 = sphi 0, %s63
      %s64 = sphi 0, %s61
      %s65 = sphi 0, %s64
      %s81 = sphi 0, %s65
      %s85 = sphi 0, %s85
      %s87 = sphi 0, %s85
      %s88 = sphi 0, %s87
      %s102 = sphi 0, %s88
      %s106 = sphi 0, %s106
      %s108 = sphi 0, %s106
      %s109 = sphi 0, %s108
      %s123 = sphi 0, %s109
      %s127 = sphi 0, %s127
      %s129 = sphi 0, %s127
      %s130 = sphi 0, %s129
      %s144 = sphi 0, %s130
      %s148 = sphi 0, %s148
      %s150 = sphi 0, %s148
      %s151 = sphi 0, %s150
      %s165 = sphi 0, %s151
      %s169 = sphi 0, %s169
      %s171 = sphi 0, %s169
      %s172 = sphi 0, %s171
      %s186 = sphi 0, %s172
      %s190 = sphi 0, %s190
      %s192 = sphi 0, %s190
      %s193 = sphi 0, %s192
      %s207 = sphi 0, %s193
      %s213 = sphi 0, %s215
      %s216 = sphi 0, %s213
      %s217 = sphi 0, %s216
      %s233 = sphi 0, %s217
    $region4: #{tpu_custom_call.1} parent=1 // loop_header_branch
      %28 = sbr.rel (%p26) target = $region8
    $region5: #{tpu_custom_call.1} parent=1 // loop_body
      %s30 = ssub.s32 %s25, 1
      %s31 = ssub.s32 %s25, 2
      %s32 = sadd.s32 %s25, 1
      %s33 = ssub.s32 %s25, %s32
      %p34 = scmp.eq.s32.totalorder %s33, 0
      %s36 = sadd.s32 %s35, 1
      %s37 = scalar_select %p34, %s35, %s36
      %p40 = pneg %p34
      %p41 = scmp.eq.s32.totalorder %s25, 7
      %p42 = por %p40, %p41
      %p43 = scmp.ne.s32.totalorder %s35, %s38
      %p44 = scmp.eq.s32.totalorder %s25, 0
      %p45 = por %p43, %p44
      %p46 = scmp.ne.s32.totalorder %s35, %s38
      %p47 = scmp.eq.s32.totalorder %s30, 7
      %p48 = por %p46, %p47
      %p49 = scmp.ne.s32.totalorder %s38, %s39
      %p50 = scmp.eq.s32.totalorder %s30, 0
      %p51 = por %p49, %p50
      %p52 = scmp.ne.s32.totalorder %s38, %s39
      %p53 = scmp.eq.s32.totalorder %s31, 7
      %p54 = por %p52, %p53
      %p56 = scmp.ne.s32.totalorder %s39, %s55
      %p57 = scmp.eq.s32.totalorder %s31, 0
      %p58 = por %p56, %p57
      %s59 = ssub.s32 %s25, %s32
      %p60 = scmp.eq.s32.totalorder %s59, 0
      %s62 = sadd.s32 %s61, 1
      %s63 = scalar_select %p60, %s61, %s62
      %p66 = pneg %p60
      %p67 = scmp.eq.s32.totalorder %s25, 7
      %p68 = por %p66, %p67
      %p69 = scmp.ne.s32.totalorder %s61, %s64
      %p70 = scmp.eq.s32.totalorder %s25, 0
      %p71 = por %p69, %p70
      %p72 = scmp.ne.s32.totalorder %s61, %s64
      %p73 = scmp.eq.s32.totalorder %s30, 7
      %p74 = por %p72, %p73
      %p75 = scmp.ne.s32.totalorder %s64, %s65
      %p76 = scmp.eq.s32.totalorder %s30, 0
      %p77 = por %p75, %p76
      %p78 = scmp.ne.s32.totalorder %s64, %s65
      %p79 = scmp.eq.s32.totalorder %s31, 7
      %p80 = por %p78, %p79
      %p82 = scmp.ne.s32.totalorder %s65, %s81
      %p83 = scmp.eq.s32.totalorder %s31, 0
      %p84 = por %p82, %p83
      %s86 = sadd.s32 %s85, 1
      %p89 = scmp.eq.s32.totalorder %s25, 7
      %p90 = scmp.ne.s32.totalorder %s85, %s87
      %p91 = scmp.eq.s32.totalorder %s25, 0
      %p92 = por %p90, %p91
      %p93 = scmp.ne.s32.totalorder %s85, %s87
      %p94 = scmp.eq.s32.totalorder %s30, 7
      %p95 = por %p93, %p94
      %p96 = scmp.ne.s32.totalorder %s87, %s88
      %p97 = scmp.eq.s32.totalorder %s30, 0
      %p98 = por %p96, %p97
      %p99 = scmp.ne.s32.totalorder %s87, %s88
      %p100 = scmp.eq.s32.totalorder %s31, 7
      %p101 = por %p99, %p100
      %p103 = scmp.ne.s32.totalorder %s88, %s102
      %p104 = scmp.eq.s32.totalorder %s31, 0
      %p105 = por %p103, %p104
      %s107 = sadd.s32 %s106, 1
      %p110 = scmp.eq.s32.totalorder %s25, 7
      %p111 = scmp.ne.s32.totalorder %s106, %s108
      %p112 = scmp.eq.s32.totalorder %s25, 0
      %p113 = por %p111, %p112
      %p114 = scmp.ne.s32.totalorder %s106, %s108
      %p115 = scmp.eq.s32.totalorder %s30, 7
      %p116 = por %p114, %p115
      %p117 = scmp.ne.s32.totalorder %s108, %s109
      %p118 = scmp.eq.s32.totalorder %s30, 0
      %p119 = por %p117, %p118
      %p120 = scmp.ne.s32.totalorder %s108, %s109
      %p121 = scmp.eq.s32.totalorder %s31, 7
      %p122 = por %p120, %p121
      %p124 = scmp.ne.s32.totalorder %s109, %s123
      %p125 = scmp.eq.s32.totalorder %s31, 0
      %p126 = por %p124, %p125
      %s128 = sadd.s32 %s127, 1
      %p131 = scmp.eq.s32.totalorder %s25, 7
      %p132 = scmp.ne.s32.totalorder %s127, %s129
      %p133 = scmp.eq.s32.totalorder %s25, 0
      %p134 = por %p132, %p133
      %p135 = scmp.ne.s32.totalorder %s127, %s129
      %p136 = scmp.eq.s32.totalorder %s30, 7
      %p137 = por %p135, %p136
      %p138 = scmp.ne.s32.totalorder %s129, %s130
      %p139 = scmp.eq.s32.totalorder %s30, 0
      %p140 = por %p138, %p139
      %p141 = scmp.ne.s32.totalorder %s129, %s130
      %p142 = scmp.eq.s32.totalorder %s31, 7
      %p143 = por %p141, %p142
      %p145 = scmp.ne.s32.totalorder %s130, %s144
      %p146 = scmp.eq.s32.totalorder %s31, 0
      %p147 = por %p145, %p146
      %s149 = sadd.s32 %s148, 1
      %p152 = scmp.eq.s32.totalorder %s25, 7
      %p153 = scmp.ne.s32.totalorder %s148, %s150
      %p154 = scmp.eq.s32.totalorder %s25, 0
      %p155 = por %p153, %p154
      %p156 = scmp.ne.s32.totalorder %s148, %s150
      %p157 = scmp.eq.s32.totalorder %s30, 7
      %p158 = por %p156, %p157
      %p159 = scmp.ne.s32.totalorder %s150, %s151
      %p160 = scmp.eq.s32.totalorder %s30, 0
      %p161 = por %p159, %p160
      %p162 = scmp.ne.s32.totalorder %s150, %s151
      %p163 = scmp.eq.s32.totalorder %s31, 7
      %p164 = por %p162, %p163
      %p166 = scmp.ne.s32.totalorder %s151, %s165
      %p167 = scmp.eq.s32.totalorder %s31, 0
      %p168 = por %p166, %p167
      %s170 = sadd.s32 %s169, 1
      %p173 = scmp.eq.s32.totalorder %s25, 7
      %p174 = scmp.ne.s32.totalorder %s169, %s171
      %p175 = scmp.eq.s32.totalorder %s25, 0
      %p176 = por %p174, %p175
      %p177 = scmp.ne.s32.totalorder %s169, %s171
      %p178 = scmp.eq.s32.totalorder %s30, 7
      %p179 = por %p177, %p178
      %p180 = scmp.ne.s32.totalorder %s171, %s172
      %p181 = scmp.eq.s32.totalorder %s30, 0
      %p182 = por %p180, %p181
      %p183 = scmp.ne.s32.totalorder %s171, %s172
      %p184 = scmp.eq.s32.totalorder %s31, 7
      %p185 = por %p183, %p184
      %p187 = scmp.ne.s32.totalorder %s172, %s186
      %p188 = scmp.eq.s32.totalorder %s31, 0
      %p189 = por %p187, %p188
      %s191 = sadd.s32 %s190, 1
      %p194 = scmp.eq.s32.totalorder %s25, 7
      %p195 = scmp.ne.s32.totalorder %s190, %s192
      %p196 = scmp.eq.s32.totalorder %s25, 0
      %p197 = por %p195, %p196
      %p198 = scmp.ne.s32.totalorder %s190, %s192
      %p199 = scmp.eq.s32.totalorder %s30, 7
      %p200 = por %p198, %p199
      %p201 = scmp.ne.s32.totalorder %s192, %s193
      %p202 = scmp.eq.s32.totalorder %s30, 0
      %p203 = por %p201, %p202
      %p204 = scmp.ne.s32.totalorder %s192, %s193
      %p205 = scmp.eq.s32.totalorder %s31, 7
      %p206 = por %p204, %p205
      %p208 = scmp.ne.s32.totalorder %s193, %s207
      %p209 = scmp.eq.s32.totalorder %s31, 0
      %p210 = por %p208, %p209
      %s211 = ssub.s32 %s25, %s32
      %p212 = scmp.eq.s32.totalorder %s211, 0
      %s214 = sadd.s32 %s213, 1
      %s215 = scalar_select %p212, %s213, %s214
      %p218 = pneg %p212
      %p219 = scmp.eq.s32.totalorder %s25, 7
      %p220 = por %p218, %p219
      %p221 = scmp.ne.s32.totalorder %s213, %s216
      %p222 = scmp.eq.s32.totalorder %s25, 0
      %p223 = por %p221, %p222
      %p224 = scmp.ne.s32.totalorder %s213, %s216
      %p225 = scmp.eq.s32.totalorder %s30, 7
      %p226 = por %p224, %p225
      %p227 = scmp.ne.s32.totalorder %s216, %s217
      %p228 = scmp.eq.s32.totalorder %s30, 0
      %p229 = por %p227, %p228
      %p230 = scmp.ne.s32.totalorder %s216, %s217
      %p231 = scmp.eq.s32.totalorder %s31, 7
      %p232 = por %p230, %p231
      %p234 = scmp.ne.s32.totalorder %s217, %s233
      %p235 = scmp.eq.s32.totalorder %s31, 0
      %p236 = por %p234, %p235
      %p237 = scmp.le.s32.totalorder 1, %s25
      %p238 = scmp.lt.s32.totalorder %s25, 9
      %p239 = pnand %p237, %p238
      %p240 = pneg %p239
      // Predicated region
      $region9: #{tpu_custom_call.1} parent=5 // pred_check
        _
      $region10: #{tpu_custom_call.1} parent=5 // pred_check_branch
        %242 = sbr.rel (%p239) target = $region12
      $region11: #{tpu_custom_call.1} parent=5 // pred_region
        %s243 = ssub.s32 %s25, 1
        // Predicated region
        $region13: #{tpu_custom_call.1} parent=11 // pred_check
          %p244 = pneg %p98
        $region14: #{tpu_custom_call.1} parent=11 // pred_check_branch
          %246 = sbr.rel (%p244) target = $region16
        $region15: #{tpu_custom_call.1} parent=11 // pred_region
          %s248 = ssub.s32 320, 320
          %249 = vsyncadd [#allocation6], %s248
          %s250 = sshll.u32 [#allocation7], 4
          %s251 = int_to_ptr.vmem [resolvable:$true] %s250
          %256 = dma.hbm_to_vmem [thread:$0]  %s2, 320, %s251, [#allocation6], 64, 64, 4
        $region16: #{tpu_custom_call.1} parent=11 // pred_fallthru
          _
        // Predicated region
        $region17: #{tpu_custom_call.1} parent=11 // pred_check
          %p257 = pneg %p119
        $region18: #{tpu_custom_call.1} parent=11 // pred_check_branch
          %259 = sbr.rel (%p257) target = $region20
        $region19: #{tpu_custom_call.1} parent=11 // pred_region
          %s261 = ssub.s32 128, 128
          %262 = vsyncadd [#allocation9], %s261
          %s263 = sshll.u32 [#allocation8], 4
          %s264 = int_to_ptr.vmem [resolvable:$true] %s263
          %269 = dma.hbm_to_vmem [thread:$0]  %s3, 128, %s264, [#allocation9], 64, 64, 4
        $region20: #{tpu_custom_call.1} parent=11 // pred_fallthru
          _
        // Predicated region
        $region21: #{tpu_custom_call.1} parent=11 // pred_check
          %p270 = pneg %p140
        $region22: #{tpu_custom_call.1} parent=11 // pred_check_branch
          %272 = sbr.rel (%p270) target = $region24
        $region23: #{tpu_custom_call.1} parent=11 // pred_region
          %s274 = ssub.s32 128, 128
          %275 = vsyncadd [#allocation9], %s274
          %s276 = sshll.u32 [#allocation10], 4
          %s277 = int_to_ptr.vmem [resolvable:$true] %s276
          %282 = dma.hbm_to_vmem [thread:$0]  %s4, 128, %s277, [#allocation9], 64, 64, 4
        $region24: #{tpu_custom_call.1} parent=11 // pred_fallthru
          _
        // Predicated region
        $region25: #{tpu_custom_call.1} parent=11 // pred_check
          %p283 = pneg %p161
        $region26: #{tpu_custom_call.1} parent=11 // pred_check_branch
          %285 = sbr.rel (%p283) target = $region28
        $region27: #{tpu_custom_call.1} parent=11 // pred_region
          %s287 = ssub.s32 1024, 1024
          %288 = vsyncadd [#allocation12], %s287
          %s289 = sshll.u32 [#allocation11], 4
          %s290 = int_to_ptr.vmem [resolvable:$true] %s289
          %295 = dma.hbm_to_vmem [thread:$0]  %s5, 1024, %s290, [#allocation12], 64, 64, 4
        $region28: #{tpu_custom_call.1} parent=11 // pred_fallthru
          _
        // Predicated region
        $region29: #{tpu_custom_call.1} parent=11 // pred_check
          %p296 = pneg %p182
        $region30: #{tpu_custom_call.1} parent=11 // pred_check_branch
          %298 = sbr.rel (%p296) target = $region32
        $region31: #{tpu_custom_call.1} parent=11 // pred_region
          %s300 = ssub.s32 2048, 2048
          %301 = vsyncadd [#allocation12], %s300
          %s302 = sshll.u32 [#allocation13], 4
          %s303 = int_to_ptr.vmem [resolvable:$true] %s302
          %308 = dma.hbm_to_vmem [thread:$0]  %s6, 2048, %s303, [#allocation12], 64, 64, 4
        $region32: #{tpu_custom_call.1} parent=11 // pred_fallthru
          _
        // Predicated region
        $region33: #{tpu_custom_call.1} parent=11 // pred_check
          %p309 = pneg %p203
        $region34: #{tpu_custom_call.1} parent=11 // pred_check_branch
          %311 = sbr.rel (%p309) target = $region36
        $region35: #{tpu_custom_call.1} parent=11 // pred_region
          _
        $region36: #{tpu_custom_call.1} parent=11 // pred_fallthru
          _
      $region12: #{tpu_custom_call.1} parent=5 // pred_fallthru
        _
      %p312 = scmp.lt.s32.totalorder %s25, 8
      // Predicated region
      $region37: #{tpu_custom_call.1} parent=5 // pred_check
        %p313 = pneg %p312
      $region38: #{tpu_custom_call.1} parent=5 // pred_check_branch
        %315 = sbr.rel (%p313) target = $region40
      $region39: #{tpu_custom_call.1} parent=5 // pred_region
        // Predicated region
        $region41: #{tpu_custom_call.1} parent=39 // pred_check
          %p316 = pneg %p45
        $region42: #{tpu_custom_call.1} parent=39 // pred_check_branch
          %318 = sbr.rel (%p316) target = $region44
        $region43: #{tpu_custom_call.1} parent=39 // pred_region
          %s319 = sand.u32 %s35, 1
          %s320 = scalar_lea.sflag [#allocation3], %s319
          %s321 = sand.u32 %s35, 1
          %s322 = smul.addr %s321, 20
          %s323 = scalar_lea.vmem [#allocation2], %s322
          %s325 = ssub.s32 320, 320
          %326 = vsyncadd %s320, %s325
          %s327 = smul.addr %s25, 5
          %s328 = smul.addr %s327, 64
          %s329 = scalar_lea.hbm %s0, %s328
          %s330 = sshll.u32 %s323, 4
          %s331 = int_to_ptr.vmem [resolvable:$true] %s330
          %336 = dma.hbm_to_vmem [thread:$0]  %s329, 320, %s331, %s320, 64, 64, 4
        $region44: #{tpu_custom_call.1} parent=39 // pred_fallthru
          _
        // Predicated region
        $region45: #{tpu_custom_call.1} parent=39 // pred_check
          %p337 = pneg %p71
        $region46: #{tpu_custom_call.1} parent=39 // pred_check_branch
          %339 = sbr.rel (%p337) target = $region48
        $region47: #{tpu_custom_call.1} parent=39 // pred_region
          %s340 = sand.u32 %s25, 1
          %s341 = scalar_lea.sflag [#allocation6], %s340
          %s342 = sand.u32 %s61, 1
          %s343 = smul.addr %s342, 8
          %s344 = scalar_lea.vmem [#allocation5], %s343
          %s346 = ssub.s32 128, 128
          %347 = vsyncadd %s341, %s346
          %s348 = smul.addr %s25, 2
          %s349 = smul.addr %s348, 64
          %s350 = scalar_lea.hbm %s1, %s349
          %s351 = sshll.u32 %s344, 4
          %s352 = int_to_ptr.vmem [resolvable:$true] %s351
          %357 = dma.hbm_to_vmem [thread:$0]  %s350, 128, %s352, %s341, 64, 64, 4
        $region48: #{tpu_custom_call.1} parent=39 // pred_fallthru
          _
      $region40: #{tpu_custom_call.1} parent=5 // pred_fallthru
        _
      %p358 = scmp.le.s32.totalorder 1, %s25
      %p359 = scmp.lt.s32.totalorder %s25, 9
      %p360 = pnand %p358, %p359
      %p361 = pneg %p360
      // Predicated region
      $region49: #{tpu_custom_call.1} parent=5 // pred_check
        _
      $region50: #{tpu_custom_call.1} parent=5 // pred_check_branch
        %363 = sbr.rel (%p360) target = $region52
      $region51: #{tpu_custom_call.1} parent=5 // pred_region
        %s364 = ssub.s32 %s25, 1
        %s365 = sand.u32 %s38, 1
        %s366 = scalar_lea.sflag [#allocation3], %s365
        %s367 = sand.u32 %s38, 1
        %s368 = smul.addr %s367, 20
        %s369 = scalar_lea.vmem [#allocation2], %s368
        // Predicated region
        $region53: #{tpu_custom_call.1} parent=51 // pred_check
          %p370 = pneg %p51
        $region54: #{tpu_custom_call.1} parent=51 // pred_check_branch
          %372 = sbr.rel (%p370) target = $region56
        $region55: #{tpu_custom_call.1} parent=51 // pred_region
          %373 = dma.done %s366, 320
        $region56: #{tpu_custom_call.1} parent=51 // pred_fallthru
          _
        %s374 = sand.u32 %s30, 1
        %s375 = scalar_lea.sflag [#allocation6], %s374
        %s376 = sand.u32 %s64, 1
        %s377 = smul.addr %s376, 8
        %s378 = scalar_lea.vmem [#allocation5], %s377
        // Predicated region
        $region57: #{tpu_custom_call.1} parent=51 // pred_check
          %p379 = pneg %p77
        $region58: #{tpu_custom_call.1} parent=51 // pred_check_branch
          %381 = sbr.rel (%p379) target = $region60
        $region59: #{tpu_custom_call.1} parent=51 // pred_region
          %382 = dma.done %s375, 128
        $region60: #{tpu_custom_call.1} parent=51 // pred_fallthru
          _
        // Predicated region
        $region61: #{tpu_custom_call.1} parent=51 // pred_check
          %p383 = pneg %p98
        $region62: #{tpu_custom_call.1} parent=51 // pred_check_branch
          %385 = sbr.rel (%p383) target = $region64
        $region63: #{tpu_custom_call.1} parent=51 // pred_region
          %386 = dma.done [#allocation6], 320
        $region64: #{tpu_custom_call.1} parent=51 // pred_fallthru
          _
        // Predicated region
        $region65: #{tpu_custom_call.1} parent=51 // pred_check
          %p387 = pneg %p119
        $region66: #{tpu_custom_call.1} parent=51 // pred_check_branch
          %389 = sbr.rel (%p387) target = $region68
        $region67: #{tpu_custom_call.1} parent=51 // pred_region
          %390 = dma.done [#allocation9], 128
        $region68: #{tpu_custom_call.1} parent=51 // pred_fallthru
          _
        // Predicated region
        $region69: #{tpu_custom_call.1} parent=51 // pred_check
          %p391 = pneg %p140
        $region70: #{tpu_custom_call.1} parent=51 // pred_check_branch
          %393 = sbr.rel (%p391) target = $region72
        $region71: #{tpu_custom_call.1} parent=51 // pred_region
          %394 = dma.done [#allocation9], 128
        $region72: #{tpu_custom_call.1} parent=51 // pred_fallthru
          _
        // Predicated region
        $region73: #{tpu_custom_call.1} parent=51 // pred_check
          %p395 = pneg %p161
        $region74: #{tpu_custom_call.1} parent=51 // pred_check_branch
          %397 = sbr.rel (%p395) target = $region76
        $region75: #{tpu_custom_call.1} parent=51 // pred_region
          %398 = dma.done [#allocation12], 1024
        $region76: #{tpu_custom_call.1} parent=51 // pred_fallthru
          _
        // Predicated region
        $region77: #{tpu_custom_call.1} parent=51 // pred_check
          %p399 = pneg %p182
        $region78: #{tpu_custom_call.1} parent=51 // pred_check_branch
          %401 = sbr.rel (%p399) target = $region80
        $region79: #{tpu_custom_call.1} parent=51 // pred_region
          %402 = dma.done [#allocation12], 2048
        $region80: #{tpu_custom_call.1} parent=51 // pred_fallthru
          _
        %s403 = sand.u32 %s38, 1
        %s404 = scalar_lea.sflag [#allocation3], %s403
        %s405 = sand.u32 %s38, 1
        %s406 = smul.addr %s405, 20
        %s407 = scalar_lea.vmem [#allocation2], %s406
        %p408 = pneg %p51
        %p409 = pneg %p48
        %s410 = sand.u32 %s30, 1
        %s411 = scalar_lea.sflag [#allocation6], %s410
        %s412 = sand.u32 %s64, 1
        %s413 = smul.addr %s412, 8
        %s414 = scalar_lea.vmem [#allocation5], %s413
        %p415 = pneg %p77
        %p416 = pneg %p74
        %p417 = pneg %p98
        %p418 = pneg %p95
        %p419 = pneg %p119
        %p420 = pneg %p116
        %p421 = pneg %p140
        %p422 = pneg %p137
        %p423 = pneg %p161
        %p424 = pneg %p158
        %p425 = pneg %p182
        %p426 = pneg %p179
        %p427 = pneg %p203
        %p428 = pneg %p200
        %p429 = pneg %p229
        %p430 = pneg %p226
        %s431 = sand.u32 %s216, 1
        %s432 = scalar_lea.sflag [#allocation4], %s431
        %s433 = sand.u32 %s216, 1
        %s434 = smul.addr %s433, 8
        %s435 = scalar_lea.vmem [#allocation14], %s434
        %v437 = vld [vmem:[%s369] sm:$0xf]
        %v438 = vld [vmem:[%s369 + $0x4] sm:$0xf]
        %v439 = vld [vmem:[%s369 + $0x8] sm:$0xf]
        %v440 = vld [vmem:[%s369 + $0xc] sm:$0xf]
        %v441 = vld [vmem:[%s369 + $0x10] sm:$0xf]
        %v442 = vld [vmem:[#allocation11] sm:$0xf]
        %v443 = vld [vmem:[#allocation11 + $0x4] sm:$0xf]
        %v444 = vld [vmem:[#allocation11 + $0x8] sm:$0xf]
        %v445 = vld [vmem:[#allocation11 + $0xc] sm:$0xf]
        %v446 = vld [vmem:[#allocation11 + $0x10] sm:$0xf]
        %v447 = vld [vmem:[#allocation11 + $0x14] sm:$0xf]
        %v448 = vld [vmem:[#allocation11 + $0x18] sm:$0xf]
        %v449 = vld [vmem:[#allocation11 + $0x1c] sm:$0xf]
        %v450 = vld [vmem:[#allocation11 + $0x20] sm:$0xf]
        %v451 = vld [vmem:[#allocation11 + $0x24] sm:$0xf]
        %v452 = vld [vmem:[#allocation11 + $0x28] sm:$0xf]
        %v453 = vld [vmem:[#allocation11 + $0x2c] sm:$0xf]
        %v454 = vld [vmem:[#allocation11 + $0x30] sm:$0xf]
        %v455 = vld [vmem:[#allocation11 + $0x34] sm:$0xf]
        %v456 = vld [vmem:[#allocation11 + $0x38] sm:$0xf]
        %v457 = vld [vmem:[#allocation11 + $0x3c] sm:$0xf]
        %v463 = vunpack.c.l.b16 %v437
        %v464 = vunpack.c.l.b16 %v438
        %v465 = vunpack.c.l.b16 %v439
        %v466 = vunpack.c.l.b16 %v440
        %v467 = vunpack.c.l.b16 %v441
        %v468 = vpack.c.b16 %v464, %v463
        %v469 = vpack.c.b16 %v466, %v465
        %v470 = vpack.c.b16 %v467, %v467
        %v490 = vunpack.c.l.b16 %v442
        %v491 = vunpack.c.l.b16 %v443
        %v492 = vunpack.c.l.b16 %v444
        %v493 = vunpack.c.l.b16 %v445
        %v494 = vunpack.c.l.b16 %v446
        %v495 = vunpack.c.l.b16 %v447
        %v496 = vunpack.c.l.b16 %v448
        %v497 = vunpack.c.l.b16 %v449
        %v498 = vunpack.c.l.b16 %v450
        %v499 = vunpack.c.l.b16 %v451
        %v500 = vunpack.c.l.b16 %v452
        %v501 = vunpack.c.l.b16 %v453
        %v502 = vunpack.c.l.b16 %v454
        %v503 = vunpack.c.l.b16 %v455
        %v504 = vunpack.c.l.b16 %v456
        %v505 = vunpack.c.l.b16 %v457
        %v506 = vpack.c.b16 %v491, %v490
        %v507 = vpack.c.b16 %v493, %v492
        %v508 = vpack.c.b16 %v495, %v494
        %v509 = vpack.c.b16 %v497, %v496
        %v510 = vpack.c.b16 %v499, %v498
        %v511 = vpack.c.b16 %v501, %v500
        %v512 = vpack.c.b16 %v503, %v502
        %v513 = vpack.c.b16 %v505, %v504
        %522 = vmatprep.subr.bf16.mxu0 0
        %523 = vmatpush1.bf16.msra.mxu0 %v513
        %524 = vmatprep.subr.bf16.mxu0 0
        %525 = vmatpush1.bf16.msra.mxu0 %v512
        %526 = vmatprep.subr.bf16.mxu0 0
        %527 = vmatpush1.bf16.msra.mxu0 %v511
        %528 = vmatprep.subr.bf16.mxu0 0
        %529 = vmatpush1.bf16.msra.mxu0 %v510
        %530 = vmatprep.subr.bf16.mxu0 0
        %531 = vmatpush1.bf16.msra.mxu0 %v509
        %532 = vmatprep.subr.bf16.mxu0 0
        %533 = vmatpush1.bf16.msra.mxu0 %v508
        %534 = vmatprep.subr.bf16.mxu0 0
        %535 = vmatpush1.bf16.msra.mxu0 %v507
        %536 = vmatprep.subr.bf16.mxu0 0
        %537 = vmatpush1.bf16.msra.mxu0 %v506
        %538 = vmatprep.subr.bf16.mxu0 0
        %539 = vmatpush2.bf16.msra.mxu0 0
        %540 = vmatprep.subr.bf16.mxu0 0
        %541 = vmatpush2.bf16.msra.mxu0 0
        %542 = vmatprep.subr.bf16.mxu0 0
        %543 = vmatpush2.bf16.msra.mxu0 0
        %544 = vmatprep.subr.bf16.mxu0 0
        %545 = vmatpush2.bf16.msra.mxu0 0
        %546 = vmatprep.subr.bf16.mxu0 0
        %547 = vmatpush2.bf16.msra.mxu0 0
        %548 = vmatprep.subr.bf16.mxu0 0
        %549 = vmatpush2.bf16.msra.mxu0 0
        %550 = vmatprep.subr.bf16.mxu0 0
        %551 = vmatpush2.bf16.msra.mxu0 0
        %552 = vmatprep.subr.bf16.mxu0 0
        %553 = vmatpush2.bf16.msra.mxu0 0
        %554 = vmatprep.mubr.bf16.mxu0 0
        %555 = vmatmul.mubr.bf16.gmra.mxu0 %v468
        %v556 = vpop.f32.mrf.mxu0
        %v557 = vadd.f32 0.0, %v556
        %v558 = vpop.f32.mrf.mxu0
        %v559 = vpop.f32.mrf.mxu0
        %v560 = vadd.f32 0.0, %v559
        %v561 = vpop.f32.mrf.mxu0
        %562 = vmatprep.mubr.bf16.mxu0 0
        %563 = vmatmul.mubr.bf16.gmra.mxu0 %v469
        %v564 = vpop.f32.mrf.mxu0
        %v565 = vadd.f32 0.0, %v564
        %v566 = vpop.f32.mrf.mxu0
        %v567 = vpop.f32.mrf.mxu0
        %v568 = vadd.f32 0.0, %v567
        %v569 = vpop.f32.mrf.mxu0
        %570 = vmatprep.mubr.bf16.mxu0 0
        %571 = vmatmul.mubr.bf16.gmra.mxu0 %v470
        %v572 = vpop.f32.mrf.mxu0
        %v573 = vadd.f32 0.0, %v572
        %v574 = vpop.f32.mrf.mxu0
        %v575 = vpop.f32.mrf.mxu0
        %v576 = vpop.f32.mrf.mxu0
        %577 = vdwg.mxu0
        %v578 = vld [vmem:[#allocation7] sm:$0xf]
        %v579 = vld [vmem:[#allocation7 + $0x4] sm:$0xf]
        %v580 = vld [vmem:[#allocation7 + $0x8] sm:$0xf]
        %v581 = vld [vmem:[#allocation7 + $0xc] sm:$0xf]
        %v582 = vld [vmem:[#allocation7 + $0x10] sm:$0xf]
        %v583 = vpack.c.bf16 %v560, %v557
        %v584 = vpack.c.bf16 %v568, %v565
        %v585 = vpack.c.bf16 %v573, %v573
        %v586 = vld [vmem:[%s7] sm:$0x1]
        %v588 = vlaneseq
        %v589 = vshrl.u32 %v588, 7
        %v590 = vsub.s32 0, %v589
        %v591 = vrot.slane %v586, %v590
        %v598 = vunpack.c.l.b16 %v578
        %v599 = vunpack.c.l.b16 %v579
        %v600 = vunpack.c.l.b16 %v580
        %v601 = vunpack.c.l.b16 %v581
        %v602 = vunpack.c.l.b16 %v582
        %v603 = vpack.c.b16 %v599, %v598
        %v604 = vpack.c.b16 %v601, %v600
        %v605 = vpack.c.b16 %v602, %v602
        %vm606 = vcmask 326656
        %v608 = vsel %vm606, %v603, 0
        %v611 = vsel %vm606, %v604, 0
        %v614 = vsel %vm606, %v605, 0
        %vm616 = vcmask 1043456
        %v618 = vsel %vm616, %v585, 0
        %620 = vmatprep.subr.bf16.mxu0 0
        %621 = vmatpush1.bf16.msra.mxu0 0
        %622 = vmatprep.subr.bf16.mxu0 0
        %623 = vmatpush1.bf16.msra.mxu0 0
        %624 = vmatprep.subr.bf16.mxu0 0
        %625 = vmatpush1.bf16.msra.mxu0 0
        %626 = vmatprep.subr.bf16.mxu0 0
        %627 = vmatpush1.bf16.msra.mxu0 0
        %628 = vmatprep.subr.bf16.mxu0 0
        %629 = vmatpush1.bf16.msra.mxu0 0
        %630 = vmatprep.subr.bf16.mxu0 0
        %631 = vmatpush1.bf16.msra.mxu0 %v618
        %632 = vmatprep.subr.bf16.mxu0 0
        %633 = vmatpush1.bf16.msra.mxu0 %v584
        %634 = vmatprep.subr.bf16.mxu0 0
        %635 = vmatpush1.bf16.msra.mxu0 %v583
        %636 = vmatprep.subr.bf16.mxu0 0
        %637 = vmatpush2.bf16.msra.mxu0 0
        %638 = vmatprep.subr.bf16.mxu0 0
        %639 = vmatpush2.bf16.msra.mxu0 0
        %640 = vmatprep.subr.bf16.mxu0 0
        %641 = vmatpush2.bf16.msra.mxu0 0
        %642 = vmatprep.subr.bf16.mxu0 0
        %643 = vmatpush2.bf16.msra.mxu0 0
        %644 = vmatprep.subr.bf16.mxu0 0
        %645 = vmatpush2.bf16.msra.mxu0 0
        %646 = vmatprep.subr.bf16.mxu0 0
        %647 = vmatpush2.bf16.msra.mxu0 0
        %648 = vmatprep.subr.bf16.mxu0 0
        %649 = vmatpush2.bf16.msra.mxu0 0
        %650 = vmatprep.subr.bf16.mxu0 0
        %651 = vmatpush2.bf16.msra.mxu0 0
        %652 = vmatprep.mubr.bf16.mxu0 0
        %653 = vmatmul.mubr.bf16.gmra.mxu0 %v608
        %v654 = vpop.f32.mrf.mxu0
        %v655 = vadd.f32 %v591, %v654
        %v656 = vpop.f32.mrf.mxu0
        %v657 = vpop.f32.mrf.mxu0
        %v658 = vadd.f32 %v591, %v657
        %v659 = vpop.f32.mrf.mxu0
        %660 = vmatprep.mubr.bf16.mxu0 0
        %661 = vmatmul.mubr.bf16.gmra.mxu0 %v611
        %v662 = vpop.f32.mrf.mxu0
        %v663 = vadd.f32 %v591, %v662
        %v664 = vpop.f32.mrf.mxu0
        %v665 = vpop.f32.mrf.mxu0
        %v666 = vadd.f32 %v591, %v665
        %v667 = vpop.f32.mrf.mxu0
        %668 = vmatprep.mubr.bf16.mxu0 0
        %669 = vmatmul.mubr.bf16.gmra.mxu0 %v614
        %v670 = vpop.f32.mrf.mxu0
        %v671 = vadd.f32 %v591, %v670
        %v672 = vpop.f32.mrf.mxu0
        %v673 = vpop.f32.mrf.mxu0
        %v674 = vpop.f32.mrf.mxu0
        %675 = vdwg.mxu0
        %v676 = vmax.f32 %v655, 0.0
        %v677 = vmax.f32 %v658, 0.0
        %v678 = vmax.f32 %v663, 0.0
        %v679 = vmax.f32 %v666, 0.0
        %v680 = vmax.f32 %v671, 0.0
        %v681 = vld [vmem:[#allocation8] sm:$0xf]
        %v682 = vld [vmem:[#allocation8 + $0x4] sm:$0xf]
        %v683 = vpack.c.bf16 %v677, %v676
        %v684 = vpack.c.bf16 %v679, %v678
        %v685 = vpack.c.bf16 %v680, %v680
        %v688 = vunpack.c.l.b16 %v681
        %v689 = vunpack.c.l.b16 %v682
        %v690 = vpack.c.b16 %v689, %v688
        %v692 = vsel %vm606, %v690, 0
        %v695 = vsel %vm616, %v685, 0
        %697 = vmatprep.subr.bf16.mxu0 0
        %698 = vmatpush1.bf16.msra.mxu0 0
        %699 = vmatprep.subr.bf16.mxu0 0
        %700 = vmatpush1.bf16.msra.mxu0 0
        %701 = vmatprep.subr.bf16.mxu0 0
        %702 = vmatpush1.bf16.msra.mxu0 0
        %703 = vmatprep.subr.bf16.mxu0 0
        %704 = vmatpush1.bf16.msra.mxu0 0
        %705 = vmatprep.subr.bf16.mxu0 0
        %706 = vmatpush1.bf16.msra.mxu0 0
        %707 = vmatprep.subr.bf16.mxu0 0
        %708 = vmatpush1.bf16.msra.mxu0 %v695
        %709 = vmatprep.subr.bf16.mxu0 0
        %710 = vmatpush1.bf16.msra.mxu0 %v684
        %711 = vmatprep.subr.bf16.mxu0 0
        %712 = vmatpush1.bf16.msra.mxu0 %v683
        %713 = vmatprep.subr.bf16.mxu0 0
        %714 = vmatpush2.bf16.msra.mxu0 0
        %715 = vmatprep.subr.bf16.mxu0 0
        %716 = vmatpush2.bf16.msra.mxu0 0
        %717 = vmatprep.subr.bf16.mxu0 0
        %718 = vmatpush2.bf16.msra.mxu0 0
        %719 = vmatprep.subr.bf16.mxu0 0
        %720 = vmatpush2.bf16.msra.mxu0 0
        %721 = vmatprep.subr.bf16.mxu0 0
        %722 = vmatpush2.bf16.msra.mxu0 0
        %723 = vmatprep.subr.bf16.mxu0 0
        %724 = vmatpush2.bf16.msra.mxu0 0
        %725 = vmatprep.subr.bf16.mxu0 0
        %726 = vmatpush2.bf16.msra.mxu0 0
        %727 = vmatprep.subr.bf16.mxu0 0
        %728 = vmatpush2.bf16.msra.mxu0 0
        %729 = vmatprep.mubr.bf16.mxu0 0
        %730 = vmatmul.mubr.bf16.gmra.mxu0 %v692
        %v731 = vpop.f32.mrf.mxu0
        %v732 = vadd.f32 0.0, %v731
        %v733 = vpop.f32.mrf.mxu0
        %v734 = vpop.f32.mrf.mxu0
        %v735 = vadd.f32 0.0, %v734
        %v736 = vpop.f32.mrf.mxu0
        %737 = vdwg.mxu0
        %v738 = vld [vmem:[%s378] sm:$0xf]
        %v739 = vld [vmem:[%s378 + $0x4] sm:$0xf]
        %v740 = vld [vmem:[#allocation13] sm:$0xf]
        %v741 = vld [vmem:[#allocation13 + $0x4] sm:$0xf]
        %v742 = vld [vmem:[#allocation13 + $0x8] sm:$0xf]
        %v743 = vld [vmem:[#allocation13 + $0xc] sm:$0xf]
        %v744 = vld [vmem:[#allocation13 + $0x10] sm:$0xf]
        %v745 = vld [vmem:[#allocation13 + $0x14] sm:$0xf]
        %v746 = vld [vmem:[#allocation13 + $0x18] sm:$0xf]
        %v747 = vld [vmem:[#allocation13 + $0x1c] sm:$0xf]
        %v748 = vld [vmem:[#allocation13 + $0x20] sm:$0xf]
        %v749 = vld [vmem:[#allocation13 + $0x24] sm:$0xf]
        %v750 = vld [vmem:[#allocation13 + $0x28] sm:$0xf]
        %v751 = vld [vmem:[#allocation13 + $0x2c] sm:$0xf]
        %v752 = vld [vmem:[#allocation13 + $0x30] sm:$0xf]
        %v753 = vld [vmem:[#allocation13 + $0x34] sm:$0xf]
        %v754 = vld [vmem:[#allocation13 + $0x38] sm:$0xf]
        %v755 = vld [vmem:[#allocation13 + $0x3c] sm:$0xf]
        %v756 = vpack.c.bf16 %v735, %v732
        %s757 = scalar_lea.vmem [#allocation13], 64
        %v758 = vld [vmem:[%s757] sm:$0xf]
        %v759 = vld [vmem:[%s757 + $0x4] sm:$0xf]
        %v760 = vld [vmem:[%s757 + $0x8] sm:$0xf]
        %v761 = vld [vmem:[%s757 + $0xc] sm:$0xf]
        %v762 = vld [vmem:[%s757 + $0x10] sm:$0xf]
        %v763 = vld [vmem:[%s757 + $0x14] sm:$0xf]
        %v764 = vld [vmem:[%s757 + $0x18] sm:$0xf]
        %v765 = vld [vmem:[%s757 + $0x1c] sm:$0xf]
        %v766 = vld [vmem:[%s757 + $0x20] sm:$0xf]
        %v767 = vld [vmem:[%s757 + $0x24] sm:$0xf]
        %v768 = vld [vmem:[%s757 + $0x28] sm:$0xf]
        %v769 = vld [vmem:[%s757 + $0x2c] sm:$0xf]
        %v770 = vld [vmem:[%s757 + $0x30] sm:$0xf]
        %v771 = vld [vmem:[%s757 + $0x34] sm:$0xf]
        %v772 = vld [vmem:[%s757 + $0x38] sm:$0xf]
        %v773 = vld [vmem:[%s757 + $0x3c] sm:$0xf]
        %v790 = vunpack.c.l.b16 %v758
        %v791 = vunpack.c.l.b16 %v759
        %v792 = vunpack.c.l.b16 %v760
        %v793 = vunpack.c.l.b16 %v761
        %v794 = vunpack.c.l.b16 %v762
        %v795 = vunpack.c.l.b16 %v763
        %v796 = vunpack.c.l.b16 %v764
        %v797 = vunpack.c.l.b16 %v765
        %v798 = vunpack.c.l.b16 %v766
        %v799 = vunpack.c.l.b16 %v767
        %v800 = vunpack.c.l.b16 %v768
        %v801 = vunpack.c.l.b16 %v769
        %v802 = vunpack.c.l.b16 %v770
        %v803 = vunpack.c.l.b16 %v771
        %v804 = vunpack.c.l.b16 %v772
        %v805 = vunpack.c.l.b16 %v773
        %v806 = vpack.c.b16 %v791, %v790
        %v807 = vpack.c.b16 %v793, %v792
        %v808 = vpack.c.b16 %v795, %v794
        %v809 = vpack.c.b16 %v797, %v796
        %v810 = vpack.c.b16 %v799, %v798
        %v811 = vpack.c.b16 %v801, %v800
        %v812 = vpack.c.b16 %v803, %v802
        %v813 = vpack.c.b16 %v805, %v804
        %822 = vmatprep.subr.bf16.mxu0 0
        %823 = vmatpush1.bf16.msra.mxu0 %v813
        %824 = vmatprep.subr.bf16.mxu0 0
        %825 = vmatpush1.bf16.msra.mxu0 %v812
        %826 = vmatprep.subr.bf16.mxu0 0
        %827 = vmatpush1.bf16.msra.mxu0 %v811
        %828 = vmatprep.subr.bf16.mxu0 0
        %829 = vmatpush1.bf16.msra.mxu0 %v810
        %830 = vmatprep.subr.bf16.mxu0 0
        %831 = vmatpush1.bf16.msra.mxu0 %v809
        %832 = vmatprep.subr.bf16.mxu0 0
        %833 = vmatpush1.bf16.msra.mxu0 %v808
        %834 = vmatprep.subr.bf16.mxu0 0
        %835 = vmatpush1.bf16.msra.mxu0 %v807
        %836 = vmatprep.subr.bf16.mxu0 0
        %837 = vmatpush1.bf16.msra.mxu0 %v806
        %838 = vmatprep.subr.bf16.mxu0 0
        %839 = vmatpush2.bf16.msra.mxu0 0
        %840 = vmatprep.subr.bf16.mxu0 0
        %841 = vmatpush2.bf16.msra.mxu0 0
        %842 = vmatprep.subr.bf16.mxu0 0
        %843 = vmatpush2.bf16.msra.mxu0 0
        %844 = vmatprep.subr.bf16.mxu0 0
        %845 = vmatpush2.bf16.msra.mxu0 0
        %846 = vmatprep.subr.bf16.mxu0 0
        %847 = vmatpush2.bf16.msra.mxu0 0
        %848 = vmatprep.subr.bf16.mxu0 0
        %849 = vmatpush2.bf16.msra.mxu0 0
        %850 = vmatprep.subr.bf16.mxu0 0
        %851 = vmatpush2.bf16.msra.mxu0 0
        %852 = vmatprep.subr.bf16.mxu0 0
        %853 = vmatpush2.bf16.msra.mxu0 0
        %854 = vmatprep.mubr.bf16.mxu0 0
        %855 = vmatmul.mubr.bf16.gmra.mxu0 %v756
        %v856 = vpop.f32.mrf.mxu0
        %v857 = vadd.f32 0.0, %v856
        %v858 = vpop.f32.mrf.mxu0
        %v859 = vpop.f32.mrf.mxu0
        %v860 = vadd.f32 0.0, %v859
        %v861 = vpop.f32.mrf.mxu0
        %862 = vdwg.mxu0
        %v865 = vunpack.c.l.b16 %v738
        %v866 = vunpack.c.l.b16 %v739
        %v867 = vpack.c.b16 %v866, %v865
        %v885 = vunpack.c.l.b16 %v740
        %v886 = vunpack.c.l.b16 %v741
        %v887 = vunpack.c.l.b16 %v742
        %v888 = vunpack.c.l.b16 %v743
        %v889 = vunpack.c.l.b16 %v744
        %v890 = vunpack.c.l.b16 %v745
        %v891 = vunpack.c.l.b16 %v746
        %v892 = vunpack.c.l.b16 %v747
        %v893 = vunpack.c.l.b16 %v748
        %v894 = vunpack.c.l.b16 %v749
        %v895 = vunpack.c.l.b16 %v750
        %v896 = vunpack.c.l.b16 %v751
        %v897 = vunpack.c.l.b16 %v752
        %v898 = vunpack.c.l.b16 %v753
        %v899 = vunpack.c.l.b16 %v754
        %v900 = vunpack.c.l.b16 %v755
        %v901 = vpack.c.b16 %v886, %v885
        %v902 = vpack.c.b16 %v888, %v887
        %v903 = vpack.c.b16 %v890, %v889
        %v904 = vpack.c.b16 %v892, %v891
        %v905 = vpack.c.b16 %v894, %v893
        %v906 = vpack.c.b16 %v896, %v895
        %v907 = vpack.c.b16 %v898, %v897
        %v908 = vpack.c.b16 %v900, %v899
        %917 = vmatprep.subr.bf16.mxu0 0
        %918 = vmatpush1.bf16.msra.mxu0 %v908
        %919 = vmatprep.subr.bf16.mxu0 0
        %920 = vmatpush1.bf16.msra.mxu0 %v907
        %921 = vmatprep.subr.bf16.mxu0 0
        %922 = vmatpush1.bf16.msra.mxu0 %v906
        %923 = vmatprep.subr.bf16.mxu0 0
        %924 = vmatpush1.bf16.msra.mxu0 %v905
        %925 = vmatprep.subr.bf16.mxu0 0
        %926 = vmatpush1.bf16.msra.mxu0 %v904
        %927 = vmatprep.subr.bf16.mxu0 0
        %928 = vmatpush1.bf16.msra.mxu0 %v903
        %929 = vmatprep.subr.bf16.mxu0 0
        %930 = vmatpush1.bf16.msra.mxu0 %v902
        %931 = vmatprep.subr.bf16.mxu0 0
        %932 = vmatpush1.bf16.msra.mxu0 %v901
        %933 = vmatprep.subr.bf16.mxu0 0
        %934 = vmatpush2.bf16.msra.mxu0 0
        %935 = vmatprep.subr.bf16.mxu0 0
        %936 = vmatpush2.bf16.msra.mxu0 0
        %937 = vmatprep.subr.bf16.mxu0 0
        %938 = vmatpush2.bf16.msra.mxu0 0
        %939 = vmatprep.subr.bf16.mxu0 0
        %940 = vmatpush2.bf16.msra.mxu0 0
        %941 = vmatprep.subr.bf16.mxu0 0
        %942 = vmatpush2.bf16.msra.mxu0 0
        %943 = vmatprep.subr.bf16.mxu0 0
        %944 = vmatpush2.bf16.msra.mxu0 0
        %945 = vmatprep.subr.bf16.mxu0 0
        %946 = vmatpush2.bf16.msra.mxu0 0
        %947 = vmatprep.subr.bf16.mxu0 0
        %948 = vmatpush2.bf16.msra.mxu0 0
        %949 = vmatprep.mubr.bf16.mxu0 0
        %950 = vmatmul.mubr.bf16.gmra.mxu0 %v867
        %v951 = vpop.f32.mrf.mxu0
        %v952 = vadd.f32 %v857, %v951
        %v953 = vpop.f32.mrf.mxu0
        %v954 = vpop.f32.mrf.mxu0
        %v955 = vadd.f32 %v860, %v954
        %v956 = vpop.f32.mrf.mxu0
        %957 = vdwg.mxu0
        %v958 = vld [vmem:[#allocation10] sm:$0xf]
        %v959 = vld [vmem:[#allocation10 + $0x4] sm:$0xf]
        %v960 = vpack.c.bf16 %v955, %v952
        %s961 = scalar_lea.vmem %s7, 1
        %v962 = vld [vmem:[%s961] sm:$0x1]
        %v964 = vlaneseq
        %v965 = vshrl.u32 %v964, 7
        %v966 = vsub.s32 0, %v965
        %v967 = vrot.slane %v962, %v966
        %v971 = vunpack.c.l.b16 %v958
        %v972 = vunpack.c.l.b16 %v959
        %v973 = vpack.c.b16 %v972, %v971
        %vm974 = vcmask 130048
        %v976 = vsel %vm974, %v973, 0
        %978 = vmatprep.subr.bf16.mxu0 0
        %979 = vmatpush1.bf16.msra.mxu0 0
        %980 = vmatprep.subr.bf16.mxu0 0
        %981 = vmatpush1.bf16.msra.mxu0 0
        %982 = vmatprep.subr.bf16.mxu0 0
        %983 = vmatpush1.bf16.msra.mxu0 0
        %984 = vmatprep.subr.bf16.mxu0 0
        %985 = vmatpush1.bf16.msra.mxu0 0
        %986 = vmatprep.subr.bf16.mxu0 0
        %987 = vmatpush1.bf16.msra.mxu0 0
        %988 = vmatprep.subr.bf16.mxu0 0
        %989 = vmatpush1.bf16.msra.mxu0 0
        %990 = vmatprep.subr.bf16.mxu0 0
        %991 = vmatpush1.bf16.msra.mxu0 0
        %992 = vmatprep.subr.bf16.mxu0 0
        %993 = vmatpush1.bf16.msra.mxu0 %v960
        %994 = vmatprep.subr.bf16.mxu0 0
        %995 = vmatpush2.bf16.msra.mxu0 0
        %996 = vmatprep.subr.bf16.mxu0 0
        %997 = vmatpush2.bf16.msra.mxu0 0
        %998 = vmatprep.subr.bf16.mxu0 0
        %999 = vmatpush2.bf16.msra.mxu0 0
        %1000 = vmatprep.subr.bf16.mxu0 0
        %1001 = vmatpush2.bf16.msra.mxu0 0
        %1002 = vmatprep.subr.bf16.mxu0 0
        %1003 = vmatpush2.bf16.msra.mxu0 0
        %1004 = vmatprep.subr.bf16.mxu0 0
        %1005 = vmatpush2.bf16.msra.mxu0 0
        %1006 = vmatprep.subr.bf16.mxu0 0
        %1007 = vmatpush2.bf16.msra.mxu0 0
        %1008 = vmatprep.subr.bf16.mxu0 0
        %1009 = vmatpush2.bf16.msra.mxu0 0
        %1010 = vmatprep.mubr.bf16.mxu0 0
        %1011 = vmatmul.mubr.bf16.gmra.mxu0 %v976
        %v1012 = vpop.f32.mrf.mxu0
        %v1013 = vadd.f32 %v967, %v1012
        %v1014 = vpop.f32.mrf.mxu0
        %v1015 = vpop.f32.mrf.mxu0
        %v1016 = vadd.f32 %v967, %v1015
        %v1017 = vpop.f32.mrf.mxu0
        %1018 = vdwg.mxu0
        %v1019 = vmax.f32 %v1013, 0.0
        %v1020 = vmax.f32 %v1016, 0.0
        %v1021 = vadd.f32 %v1019, %v1020
        %v1022 = vrot.slane %v1021, 4
        %v1023 = vadd.f32 %v1021, %v1022
        %v1024 = vrot.slane %v1023, 2
        %v1025 = vadd.f32 %v1023, %v1024
        %v1026 = vrot.slane %v1025, 1
        %v1027 = vadd.f32 %v1025, %v1026
        %v1028 = vrcp.pop 16.0
        %v1029 = vmul.f32 %v1027, %v1028
        %1030 = vst [vmem:[%s435] sm:$0xff] %v1029
        %s1031 = sand.u32 %s216, 1
        %s1032 = scalar_lea.sflag [#allocation4], %s1031
        %s1033 = sand.u32 %s216, 1
        %s1034 = smul.addr %s1033, 8
        %s1035 = scalar_lea.vmem [#allocation14], %s1034
        // Predicated region
        $region81: #{tpu_custom_call.1} parent=51 // pred_check
          %p1036 = pneg %p226
        $region82: #{tpu_custom_call.1} parent=51 // pred_check_branch
          %1038 = sbr.rel (%p1036) target = $region84
        $region83: #{tpu_custom_call.1} parent=51 // pred_region
          %s1040 = ssub.s32 128, 128
          %1041 = vsyncadd %s1032, %s1040
          %s1042 = smul.addr %s30, 128
          %s1043 = scalar_lea.hbm %s8, %s1042
          %s1045 = sshll.u32 %s1035, 4
          %s1046 = int_to_ptr.vmem [resolvable:$true] %s1045
          %1048 = dma.vmem_to_hbm [thread:$0]  %s1046, 128, %s1043, %s1032
        $region84: #{tpu_custom_call.1} parent=51 // pred_fallthru
          _
      $region52: #{tpu_custom_call.1} parent=5 // pred_fallthru
        _
      %p1049 = scmp.le.s32.totalorder 2, %s25
      // Predicated region
      $region85: #{tpu_custom_call.1} parent=5 // pred_check
        %p1050 = pneg %p1049
      $region86: #{tpu_custom_call.1} parent=5 // pred_check_branch
        %1052 = sbr.rel (%p1050) target = $region88
      $region87: #{tpu_custom_call.1} parent=5 // pred_region
        %s1053 = ssub.s32 %s25, 2
        // Predicated region
        $region89: #{tpu_custom_call.1} parent=87 // pred_check
          %p1054 = pneg %p232
        $region90: #{tpu_custom_call.1} parent=87 // pred_check_branch
          %1056 = sbr.rel (%p1054) target = $region92
        $region91: #{tpu_custom_call.1} parent=87 // pred_region
          %s1057 = sand.u32 %s217, 1
          %s1058 = scalar_lea.sflag [#allocation4], %s1057
          %s1059 = sand.u32 %s217, 1
          %s1060 = smul.addr %s1059, 8
          %s1061 = scalar_lea.vmem [#allocation14], %s1060
          %1062 = dma.done %s1058, 128
        $region92: #{tpu_custom_call.1} parent=87 // pred_fallthru
          _
      $region88: #{tpu_custom_call.1} parent=5 // pred_fallthru
        _
    $region6: #{tpu_custom_call.1} parent=1 // loop_footer
      %s29 = sadd.s32 1, %s25
    $region7: #{tpu_custom_call.1} parent=1 // loop_footer_branch
      %24 = sbr.rel target = $region3
    $region8: #{tpu_custom_call.1} parent=1 // loop_exit
      _
    %1063 = vsyncpa [#allocation3], 1
    %s1064 = scalar_lea.sflag [#allocation3], 1
    %1065 = vsyncpa %s1064, 1
    %1066 = vsyncpa [#allocation6], 1
    %s1067 = scalar_lea.sflag [#allocation6], 1
    %1068 = vsyncpa %s1067, 1
    %1069 = vsyncpa [#allocation9], 1
    %1070 = vsyncpa [#allocation12], 1
    %1071 = vsyncpa [#allocation4], 1
    %s1072 = scalar_lea.sflag [#allocation4], 1
    %1073 = vsyncpa %s1072, 1

</llo_original>
